<compile_context>
chip_gen: v7x
topology: tpu7x:2x2x1
jax: 0.10.0
libtpu: 0.0.40
codegen_flags: <defaults>
</compile_context>

<pallas_src>
import math

import jax
import jax.numpy as jnp
from jax import lax
from jax.experimental import pallas as pl
from jax.experimental.pallas import tpu as pltpu

_LANES = 128
# Contract lhs dim 0 with rhs dim 0: (P, F)^T @ (P, Npad) -> (F, Npad).
# The MXU consumes the transposed LHS directly; no explicit transpose needed.
_TN_DIMS = (((0,), (0,)), ((), ()))


def _attn_core(x_ref, y_ref, z_ref, w_ref, o_ref, bias):
    w = w_ref[...]                                   # (P, Npad) bf16, resident

    def proj(src_ref):
        acc = lax.dot_general(src_ref[0], w, _TN_DIMS,
                              preferred_element_type=jnp.float32)
        if bias is not None:                         # statically elided branch
            acc = acc + bias
        return acc.astype(o_ref.dtype)

    # Output block is (1, 3, F, Npad): one aligned (F, Npad) slab per source.
    o_ref[0, 0] = proj(x_ref)
    o_ref[0, 1] = proj(y_ref)
    o_ref[0, 2] = proj(z_ref)


def _attn_kernel_bias(x_ref, y_ref, z_ref, w_ref, b_ref, o_ref):
    _attn_core(x_ref, y_ref, z_ref, w_ref, o_ref, bias=b_ref[0])


def _attn_kernel_nobias(x_ref, y_ref, z_ref, w_ref, o_ref):
    _attn_core(x_ref, y_ref, z_ref, w_ref, o_ref, bias=None)


def attention_forward(x, y, z, weight, bias, *, in_pointnum, in_feature,
                      head_num, use_bias):
    """JAX/Pallas equivalent of Attention.forward((x, y, z))."""
    P, F = in_pointnum, in_feature
    xr = x.reshape(-1, P, F)
    yr = y.reshape(-1, P, F)
    zr = z.reshape(-1, P, F)
    B = xr.shape[0]
    N = head_num * head_num
    n_pad = ((N + _LANES - 1) // _LANES) * _LANES    # lane-dense output width

    w = weight if n_pad == N else jnp.pad(weight, ((0, 0), (0, n_pad - N)))

    # bf16 operands / f32 accumulation: halves DMA bytes, full-rate MXU.
    xb = xr.astype(jnp.bfloat16)
    yb = yr.astype(jnp.bfloat16)
    zb = zr.astype(jnp.bfloat16)
    wb = w.astype(jnp.bfloat16)

    act_spec = pl.BlockSpec((1, P, F), lambda b: (b, 0, 0))
    in_specs = [act_spec, act_spec, act_spec,
                pl.BlockSpec((P, n_pad), lambda b: (0, 0))]  # weight resident
    inputs = [xb, yb, zb, wb]
    if use_bias:
        in_specs.append(pl.BlockSpec(memory_space=pltpu.MemorySpace.SMEM))
        inputs.append(jnp.asarray(bias, dtype=jnp.float32).reshape(1))
        kernel = _attn_kernel_bias
    else:
        kernel = _attn_kernel_nobias

    out = pl.pallas_call(
        kernel,
        out_shape=jax.ShapeDtypeStruct((B, 3, F, n_pad), jnp.float32),
        grid=(B,),
        in_specs=in_specs,
        out_specs=pl.BlockSpec((1, 3, F, n_pad), lambda b: (b, 0, 0, 0)),
        compiler_params=pltpu.CompilerParams(
            dimension_semantics=("parallel",)),
    )(*inputs)

    # (B, 3, F, Npad) -> (B*3F, N); row order matches permute(0,2,1).view(-1,P).
    return out.reshape(B * 3 * F, n_pad)[:, :N]


def init_attention_params(key, in_pointnum, head_num, use_bias):
    """Deterministic parameter init mirroring the PyTorch __init__ intent."""
    n_out = head_num * head_num
    stdv = 6.0 / math.sqrt(n_out + in_pointnum)
    weight = jax.random.uniform(key, (in_pointnum, n_out), dtype=jnp.float32,
                                minval=-stdv, maxval=stdv)
    # PyTorch: Parameter(torch.Tensor([head_num*head_num])).fill_(0.1) -> [0.1]
    bias = jnp.full((1,), 0.1, dtype=jnp.float32) if use_bias else None
    return weight, bias


if __name__ == "__main__":
    B = 2
    in_feature = 4
    in_pointnum = 16
    head_num = 8

    key = jax.random.PRNGKey(0)
    kx, ky, kz, kw = jax.random.split(key, 4)
    x = jax.random.normal(kx, (B, in_pointnum, in_feature), dtype=jnp.float32)
    y = jax.random.normal(ky, (B, in_pointnum, in_feature), dtype=jnp.float32)
    z = jax.random.normal(kz, (B, in_pointnum, in_feature), dtype=jnp.float32)

    def reference(weight, bias, use_bias, in_dtype):
        feat = jnp.concatenate(
            [x.reshape(-1, in_pointnum, in_feature),
             y.reshape(-1, in_pointnum, in_feature),
             z.reshape(-1, in_pointnum, in_feature)], axis=-1)
        feat = jnp.transpose(feat, (0, 2, 1)).reshape(-1, in_pointnum)
        ref = jnp.dot(feat.astype(in_dtype), weight.astype(in_dtype),
                      preferred_element_type=jnp.float32)
        if use_bias:
            ref = ref + bias[0]
        return ref

    for use_bias in (True, False):
        weight, bias = init_attention_params(kw, in_pointnum, head_num, use_bias)
        out = attention_forward(
            x, y, z, weight, bias,
            in_pointnum=in_pointnum, in_feature=in_feature,
            head_num=head_num, use_bias=use_bias)
        out = jax.block_until_ready(out)
        assert out.shape == (B * 3 * in_feature, head_num * head_num)

        # Tight check against a reference using the same bf16-in / f32-acc math.
        ref_bf16 = reference(weight, bias, use_bias, jnp.bfloat16)
        assert jnp.allclose(out, ref_bf16, atol=1e-3, rtol=1e-3)

        # Loose check against the pure-f32 module semantics (bf16 input rounding).
        ref_f32 = reference(weight, bias, use_bias, jnp.float32)
        assert jnp.allclose(out, ref_f32, atol=1e-1, rtol=1e-1)

    print("KERNEL_OK")
</pallas_src>

<mosaic_0001>
module attributes {stable_mosaic.version = 11 : i64} {
  func.func @_attn_kernel_bias(%arg0: i32, %arg1: memref<1x16x4xbf16, #tpu.memory_space<vmem>>, %arg2: memref<1x16x4xbf16, #tpu.memory_space<vmem>>, %arg3: memref<1x16x4xbf16, #tpu.memory_space<vmem>>, %arg4: memref<16x128xbf16, #tpu.memory_space<vmem>>, %arg5: memref<1xf32, #tpu.memory_space<smem>>, %arg6: memref<1x3x4x128xf32, #tpu.memory_space<vmem>>) attributes {dimension_semantics = [#tpu.dimension_semantics<parallel>], iteration_bounds = array<i64: 2>, scalar_prefetch = 0 : i64, scratch_operands = 0 : i64, tpu.core_type = #tpu.core_type<tc>, window_params = [{transform_indices = @transform_0, window_bounds = array<i64: 1, 16, 4>}, {transform_indices = @transform_1, window_bounds = array<i64: 1, 16, 4>}, {transform_indices = @transform_2, window_bounds = array<i64: 1, 16, 4>}, {pipeline_mode = #tpu.pipeline_mode<synchronous>, transform_indices = @transform_3, window_bounds = array<i64: 16, 128>}, {transform_indices = @transform_4, window_bounds = array<i64: 1>}, {transform_indices = @transform_5, window_bounds = array<i64: 1, 3, 4, 128>}]} {
    %c0 = arith.constant 0 : index
    %0 = memref.load %arg5[%c0] : memref<1xf32, #tpu.memory_space<smem>>
    %c0_0 = arith.constant 0 : index
    %c0_1 = arith.constant 0 : index
    %1 = vector.load %arg4[%c0_0, %c0_1] : memref<16x128xbf16, #tpu.memory_space<vmem>>, vector<16x128xbf16>
    %c0_2 = arith.constant 0 : index
    %c0_3 = arith.constant 0 : index
    %c0_4 = arith.constant 0 : index
    %2 = vector.load %arg1[%c0_2, %c0_3, %c0_4] : memref<1x16x4xbf16, #tpu.memory_space<vmem>>, vector<1x16x4xbf16>
    %3 = vector.shape_cast %2 : vector<1x16x4xbf16> to vector<16x4xbf16>
    %cst = arith.constant dense<0.000000e+00> : vector<4x128xf32>
    %4 = tpu.matmul %3, %1, %cst {dimension_numbers = #tpu.dot_dimension_numbers<[0], [0], [1], [1], [0, 1, 1, 1], [], []>} : vector<16x4xbf16>, vector<16x128xbf16>, vector<4x128xf32> -> vector<4x128xf32>
    %5 = vector.broadcast %0 : f32 to vector<4x128xf32>
    %6 = arith.addf %4, %5 : vector<4x128xf32>
    %c0_5 = arith.constant 0 : index
    %c0_6 = arith.constant 0 : index
    %c0_7 = arith.constant 0 : index
    %c0_8 = arith.constant 0 : index
    %7 = vector.load %arg6[%c0_5, %c0_6, %c0_7, %c0_8] : memref<1x3x4x128xf32, #tpu.memory_space<vmem>>, vector<1x1x4x128xf32>
    %8 = vector.shape_cast %7 : vector<1x1x4x128xf32> to vector<4x128xf32>
    %9 = vector.shape_cast %6 : vector<4x128xf32> to vector<1x1x4x128xf32>
    tpu.vector_store %arg6[%c0_5, %c0_6, %c0_7, %c0_8], %9 {strides = array<i32>} : memref<1x3x4x128xf32, #tpu.memory_space<vmem>>, vector<1x1x4x128xf32>,
    %c0_9 = arith.constant 0 : index
    %c0_10 = arith.constant 0 : index
    %c0_11 = arith.constant 0 : index
    %10 = vector.load %arg2[%c0_9, %c0_10, %c0_11] : memref<1x16x4xbf16, #tpu.memory_space<vmem>>, vector<1x16x4xbf16>
    %11 = vector.shape_cast %10 : vector<1x16x4xbf16> to vector<16x4xbf16>
    %cst_12 = arith.constant dense<0.000000e+00> : vector<4x128xf32>
    %12 = tpu.matmul %11, %1, %cst_12 {dimension_numbers = #tpu.dot_dimension_numbers<[0], [0], [1], [1], [0, 1, 1, 1], [], []>} : vector<16x4xbf16>, vector<16x128xbf16>, vector<4x128xf32> -> vector<4x128xf32>
    %13 = vector.broadcast %0 : f32 to vector<4x128xf32>
    %14 = arith.addf %12, %13 : vector<4x128xf32>
    %c0_13 = arith.constant 0 : index
    %c1 = arith.constant 1 : index
    %c0_14 = arith.constant 0 : index
    %c0_15 = arith.constant 0 : index
    %15 = vector.load %arg6[%c0_13, %c1, %c0_14, %c0_15] : memref<1x3x4x128xf32, #tpu.memory_space<vmem>>, vector<1x1x4x128xf32>
    %16 = vector.shape_cast %15 : vector<1x1x4x128xf32> to vector<4x128xf32>
    %17 = vector.shape_cast %14 : vector<4x128xf32> to vector<1x1x4x128xf32>
    tpu.vector_store %arg6[%c0_13, %c1, %c0_14, %c0_15], %17 {strides = array<i32>} : memref<1x3x4x128xf32, #tpu.memory_space<vmem>>, vector<1x1x4x128xf32>,
    %c0_16 = arith.constant 0 : index
    %c0_17 = arith.constant 0 : index
    %c0_18 = arith.constant 0 : index
    %18 = vector.load %arg3[%c0_16, %c0_17, %c0_18] : memref<1x16x4xbf16, #tpu.memory_space<vmem>>, vector<1x16x4xbf16>
    %19 = vector.shape_cast %18 : vector<1x16x4xbf16> to vector<16x4xbf16>
    %cst_19 = arith.constant dense<0.000000e+00> : vector<4x128xf32>
    %20 = tpu.matmul %19, %1, %cst_19 {dimension_numbers = #tpu.dot_dimension_numbers<[0], [0], [1], [1], [0, 1, 1, 1], [], []>} : vector<16x4xbf16>, vector<16x128xbf16>, vector<4x128xf32> -> vector<4x128xf32>
    %21 = vector.broadcast %0 : f32 to vector<4x128xf32>
    %22 = arith.addf %20, %21 : vector<4x128xf32>
    %c0_20 = arith.constant 0 : index
    %c2 = arith.constant 2 : index
    %c0_21 = arith.constant 0 : index
    %c0_22 = arith.constant 0 : index
    %23 = vector.load %arg6[%c0_20, %c2, %c0_21, %c0_22] : memref<1x3x4x128xf32, #tpu.memory_space<vmem>>, vector<1x1x4x128xf32>
    %24 = vector.shape_cast %23 : vector<1x1x4x128xf32> to vector<4x128xf32>
    %25 = vector.shape_cast %22 : vector<4x128xf32> to vector<1x1x4x128xf32>
    tpu.vector_store %arg6[%c0_20, %c2, %c0_21, %c0_22], %25 {strides = array<i32>} : memref<1x3x4x128xf32, #tpu.memory_space<vmem>>, vector<1x1x4x128xf32>,
    return
  }
  func.func @transform_0(%arg0: i32) -> (i32, i32, i32) {
    %c0_i32 = arith.constant 0 : i32
    %c0_i32_0 = arith.constant 0 : i32
    %c0_i32_1 = arith.constant 0 : i32
    return %arg0, %c0_i32, %c0_i32_0 : i32, i32, i32
  }
  func.func @transform_1(%arg0: i32) -> (i32, i32, i32) {
    %c0_i32 = arith.constant 0 : i32
    %c0_i32_0 = arith.constant 0 : i32
    %c0_i32_1 = arith.constant 0 : i32
    return %arg0, %c0_i32, %c0_i32_0 : i32, i32, i32
  }
  func.func @transform_2(%arg0: i32) -> (i32, i32, i32) {
    %c0_i32 = arith.constant 0 : i32
    %c0_i32_0 = arith.constant 0 : i32
    %c0_i32_1 = arith.constant 0 : i32
    return %arg0, %c0_i32, %c0_i32_0 : i32, i32, i32
  }
  func.func @transform_3(%arg0: i32) -> (i32, i32) {
    %c0_i32 = arith.constant 0 : i32
    %c0_i32_0 = arith.constant 0 : i32
    %c0_i32_1 = arith.constant 0 : i32
    return %c0_i32, %c0_i32_0 : i32, i32
  }
  func.func @transform_4(%arg0: i32) -> i32 {
    %c0_i32 = arith.constant 0 : i32
    %c0_i32_0 = arith.constant 0 : i32
    return %c0_i32 : i32
  }
  func.func @transform_5(%arg0: i32) -> (i32, i32, i32, i32) {
    %c0_i32 = arith.constant 0 : i32
    %c0_i32_0 = arith.constant 0 : i32
    %c0_i32_1 = arith.constant 0 : i32
    %c0_i32_2 = arith.constant 0 : i32
    return %arg0, %c0_i32, %c0_i32_0, %c0_i32_1 : i32, i32, i32, i32
  }
}

</mosaic_0001>

<llo_original>
// kernel: tpu_custom_call.1
$region0: #{tpu_custom_call.1}
  #allocation0 [shape = 'u32[]', space=smem, size = 0x4, offset = 0x4, fixed_abs, tag = 'smem constant byte address 0x4 - core index']
  #allocation1 [shape = 'u32[144,128]{1,0:T(1,128)}', space=vmem, size = 0x12000, scoped, tag = 'internal scratch']
  #allocation2 [shape = 'f32[1]{0:T(128)S(6)}', space=smem, size = 0x200, scoped, tag = 'scoped memory for tpu_custom_call.1']
  %s0 = inlined_call_operand.vmem [shape: bf16[2,16,4], index: 0, kind: input, shape index: {}]
  %s1 = inlined_call_operand.vmem [shape: bf16[2,16,4], index: 1, kind: input, shape index: {}]
  %s2 = inlined_call_operand.vmem [shape: bf16[2,16,4], index: 2, kind: input, shape index: {}]
  %s3 = inlined_call_operand.vmem [shape: bf16[16,128], index: 3, kind: input, shape index: {}]
  %s4 = inlined_call_operand.<no memory space> [shape: f32[1], index: 4, kind: input, shape index: {}]
  %s5 = inlined_call_operand.hbm [shape: f32[2,3,4,128], index: 5, kind: output, shape index: {}]
  %s6 = sld [smem:[#allocation0]]
  $region53: #{tpu_custom_call.1} parent=0
    _
  %s8 = ssub.s32 1, %s6
  %s9 = scalar_select 0, %s8, %s6
  %10 = sst [smem:[#allocation2]] %s4
  $region1: #{tpu_custom_call.1} parent=0
    #allocation3 [shape = 'u8[12288]{0}', space=vmem, size = 0x3000, scoped, tag = 'output window, operand 0']
    #allocation4 [shape = 's32[2]{0}', space=sflag, size = 0x8, scoped, tag = 'scoped memory for tpu_custom_call.1']
    %11 = vsyncpa [#allocation4], 0
    %s12 = scalar_lea.sflag [#allocation4], 1
    %13 = vsyncpa %s12, 0
    loop: start=0, step=1, limit=4
    $region2: #{tpu_custom_call.1} parent=1 // loop_pre_header
      _
    $region3: #{tpu_custom_call.1} parent=1 // loop_header
      %s15 = sphi 0, %s19
      %p16 = scmp.ge.s32.totalorder %s15, 4
      %s25 = sphi 0, %s27
      %s28 = sphi 0, %s25
      %s29 = sphi 0, %s28
      %s45 = sphi 0, %s29
      %s51 = sphi 0, %s53
      %s54 = sphi 0, %s51
      %s55 = sphi 0, %s54
      %s71 = sphi 0, %s55
      %s77 = sphi 0, %s79
      %s80 = sphi 0, %s77
      %s81 = sphi 0, %s80
      %s97 = sphi 0, %s81
      %s101 = sphi 0, %s101
      %s103 = sphi 0, %s101
      %s104 = sphi 0, %s103
      %s118 = sphi 0, %s104
      %s122 = sphi 0, %s122
      %s124 = sphi 0, %s122
      %s125 = sphi 0, %s124
      %s139 = sphi 0, %s125
      %s145 = sphi 0, %s147
      %s148 = sphi 0, %s145
      %s149 = sphi 0, %s148
      %s165 = sphi 0, %s149
    $region4: #{tpu_custom_call.1} parent=1 // loop_header_branch
      %18 = sbr.rel (%p16) target = $region8
    $region5: #{tpu_custom_call.1} parent=1 // loop_body
      %s20 = ssub.s32 %s15, 1
      %s21 = ssub.s32 %s15, 2
      %s22 = sadd.s32 %s15, 1
      %s23 = ssub.s32 %s15, %s22
      %p24 = scmp.eq.s32.totalorder %s23, 0
      %s26 = sadd.s32 %s25, 1
      %s27 = scalar_select %p24, %s25, %s26
      %p30 = pneg %p24
      %p31 = scmp.eq.s32.totalorder %s15, 1
      %p32 = por %p30, %p31
      %p33 = scmp.ne.s32.totalorder %s25, %s28
      %p34 = scmp.eq.s32.totalorder %s15, 0
      %p35 = por %p33, %p34
      %p36 = scmp.ne.s32.totalorder %s25, %s28
      %p37 = scmp.eq.s32.totalorder %s20, 1
      %p38 = por %p36, %p37
      %p39 = scmp.ne.s32.totalorder %s28, %s29
      %p40 = scmp.eq.s32.totalorder %s20, 0
      %p41 = por %p39, %p40
      %p42 = scmp.ne.s32.totalorder %s28, %s29
      %p43 = scmp.eq.s32.totalorder %s21, 1
      %p44 = por %p42, %p43
      %p46 = scmp.ne.s32.totalorder %s29, %s45
      %p47 = scmp.eq.s32.totalorder %s21, 0
      %p48 = por %p46, %p47
      %s49 = ssub.s32 %s15, %s22
      %p50 = scmp.eq.s32.totalorder %s49, 0
      %s52 = sadd.s32 %s51, 1
      %s53 = scalar_select %p50, %s51, %s52
      %p56 = pneg %p50
      %p57 = scmp.eq.s32.totalorder %s15, 1
      %p58 = por %p56, %p57
      %p59 = scmp.ne.s32.totalorder %s51, %s54
      %p60 = scmp.eq.s32.totalorder %s15, 0
      %p61 = por %p59, %p60
      %p62 = scmp.ne.s32.totalorder %s51, %s54
      %p63 = scmp.eq.s32.totalorder %s20, 1
      %p64 = por %p62, %p63
      %p65 = scmp.ne.s32.totalorder %s54, %s55
      %p66 = scmp.eq.s32.totalorder %s20, 0
      %p67 = por %p65, %p66
      %p68 = scmp.ne.s32.totalorder %s54, %s55
      %p69 = scmp.eq.s32.totalorder %s21, 1
      %p70 = por %p68, %p69
      %p72 = scmp.ne.s32.totalorder %s55, %s71
      %p73 = scmp.eq.s32.totalorder %s21, 0
      %p74 = por %p72, %p73
      %s75 = ssub.s32 %s15, %s22
      %p76 = scmp.eq.s32.totalorder %s75, 0
      %s78 = sadd.s32 %s77, 1
      %s79 = scalar_select %p76, %s77, %s78
      %p82 = pneg %p76
      %p83 = scmp.eq.s32.totalorder %s15, 1
      %p84 = por %p82, %p83
      %p85 = scmp.ne.s32.totalorder %s77, %s80
      %p86 = scmp.eq.s32.totalorder %s15, 0
      %p87 = por %p85, %p86
      %p88 = scmp.ne.s32.totalorder %s77, %s80
      %p89 = scmp.eq.s32.totalorder %s20, 1
      %p90 = por %p88, %p89
      %p91 = scmp.ne.s32.totalorder %s80, %s81
      %p92 = scmp.eq.s32.totalorder %s20, 0
      %p93 = por %p91, %p92
      %p94 = scmp.ne.s32.totalorder %s80, %s81
      %p95 = scmp.eq.s32.totalorder %s21, 1
      %p96 = por %p94, %p95
      %p98 = scmp.ne.s32.totalorder %s81, %s97
      %p99 = scmp.eq.s32.totalorder %s21, 0
      %p100 = por %p98, %p99
      %s102 = sadd.s32 %s101, 1
      %p105 = scmp.eq.s32.totalorder %s15, 1
      %p106 = scmp.ne.s32.totalorder %s101, %s103
      %p107 = scmp.eq.s32.totalorder %s15, 0
      %p108 = por %p106, %p107
      %p109 = scmp.ne.s32.totalorder %s101, %s103
      %p110 = scmp.eq.s32.totalorder %s20, 1
      %p111 = por %p109, %p110
      %p112 = scmp.ne.s32.totalorder %s103, %s104
      %p113 = scmp.eq.s32.totalorder %s20, 0
      %p114 = por %p112, %p113
      %p115 = scmp.ne.s32.totalorder %s103, %s104
      %p116 = scmp.eq.s32.totalorder %s21, 1
      %p117 = por %p115, %p116
      %p119 = scmp.ne.s32.totalorder %s104, %s118
      %p120 = scmp.eq.s32.totalorder %s21, 0
      %p121 = por %p119, %p120
      %s123 = sadd.s32 %s122, 1
      %p126 = scmp.eq.s32.totalorder %s15, 1
      %p127 = scmp.ne.s32.totalorder %s122, %s124
      %p128 = scmp.eq.s32.totalorder %s15, 0
      %p129 = por %p127, %p128
      %p130 = scmp.ne.s32.totalorder %s122, %s124
      %p131 = scmp.eq.s32.totalorder %s20, 1
      %p132 = por %p130, %p131
      %p133 = scmp.ne.s32.totalorder %s124, %s125
      %p134 = scmp.eq.s32.totalorder %s20, 0
      %p135 = por %p133, %p134
      %p136 = scmp.ne.s32.totalorder %s124, %s125
      %p137 = scmp.eq.s32.totalorder %s21, 1
      %p138 = por %p136, %p137
      %p140 = scmp.ne.s32.totalorder %s125, %s139
      %p141 = scmp.eq.s32.totalorder %s21, 0
      %p142 = por %p140, %p141
      %s143 = ssub.s32 %s15, %s22
      %p144 = scmp.eq.s32.totalorder %s143, 0
      %s146 = sadd.s32 %s145, 1
      %s147 = scalar_select %p144, %s145, %s146
      %p150 = pneg %p144
      %p151 = scmp.eq.s32.totalorder %s15, 1
      %p152 = por %p150, %p151
      %p153 = scmp.ne.s32.totalorder %s145, %s148
      %p154 = scmp.eq.s32.totalorder %s15, 0
      %p155 = por %p153, %p154
      %p156 = scmp.ne.s32.totalorder %s145, %s148
      %p157 = scmp.eq.s32.totalorder %s20, 1
      %p158 = por %p156, %p157
      %p159 = scmp.ne.s32.totalorder %s148, %s149
      %p160 = scmp.eq.s32.totalorder %s20, 0
      %p161 = por %p159, %p160
      %p162 = scmp.ne.s32.totalorder %s148, %s149
      %p163 = scmp.eq.s32.totalorder %s21, 1
      %p164 = por %p162, %p163
      %p166 = scmp.ne.s32.totalorder %s149, %s165
      %p167 = scmp.eq.s32.totalorder %s21, 0
      %p168 = por %p166, %p167
      %p169 = scmp.le.s32.totalorder 1, %s15
      %p170 = scmp.lt.s32.totalorder %s15, 3
      %p171 = pnand %p169, %p170
      %p172 = pneg %p171
      // Predicated region
      $region9: #{tpu_custom_call.1} parent=5 // pred_check
        _
      $region10: #{tpu_custom_call.1} parent=5 // pred_check_branch
        %174 = sbr.rel (%p171) target = $region12
      $region11: #{tpu_custom_call.1} parent=5 // pred_region
        %s175 = ssub.s32 %s15, 1
        // Predicated region
        $region13: #{tpu_custom_call.1} parent=11 // pred_check
          %p176 = pneg %p114
        $region14: #{tpu_custom_call.1} parent=11 // pred_check_branch
          %178 = sbr.rel (%p176) target = $region16
        $region15: #{tpu_custom_call.1} parent=11 // pred_region
          _
        $region16: #{tpu_custom_call.1} parent=11 // pred_fallthru
          _
        // Predicated region
        $region17: #{tpu_custom_call.1} parent=11 // pred_check
          %p179 = pneg %p135
        $region18: #{tpu_custom_call.1} parent=11 // pred_check_branch
          %181 = sbr.rel (%p179) target = $region20
        $region19: #{tpu_custom_call.1} parent=11 // pred_region
          _
        $region20: #{tpu_custom_call.1} parent=11 // pred_fallthru
          _
      $region12: #{tpu_custom_call.1} parent=5 // pred_fallthru
        _
      %p182 = scmp.lt.s32.totalorder %s15, 2
      // Predicated region
      $region21: #{tpu_custom_call.1} parent=5 // pred_check
        %p183 = pneg %p182
      $region22: #{tpu_custom_call.1} parent=5 // pred_check_branch
        %185 = sbr.rel (%p183) target = $region24
      $region23: #{tpu_custom_call.1} parent=5 // pred_region
        // Predicated region
        $region25: #{tpu_custom_call.1} parent=23 // pred_check
          %p186 = pneg %p35
        $region26: #{tpu_custom_call.1} parent=23 // pred_check_branch
          %188 = sbr.rel (%p186) target = $region28
        $region27: #{tpu_custom_call.1} parent=23 // pred_region
          %p189 = scmp.lt.s32.totalorder %s15, 1
          %s190 = scalar_select %p189, %s15, 1
          %s191 = smul.addr %s190, 2
          %s192 = smul.addr %s191, 4
          %s193 = scalar_lea.vmem %s0, %s192
        $region28: #{tpu_custom_call.1} parent=23 // pred_fallthru
          _
        // Predicated region
        $region29: #{tpu_custom_call.1} parent=23 // pred_check
          %p194 = pneg %p61
        $region30: #{tpu_custom_call.1} parent=23 // pred_check_branch
          %196 = sbr.rel (%p194) target = $region32
        $region31: #{tpu_custom_call.1} parent=23 // pred_region
          %p197 = scmp.lt.s32.totalorder %s15, 1
          %s198 = scalar_select %p197, %s15, 1
          %s199 = smul.addr %s198, 2
          %s200 = smul.addr %s199, 4
          %s201 = scalar_lea.vmem %s1, %s200
        $region32: #{tpu_custom_call.1} parent=23 // pred_fallthru
          _
        // Predicated region
        $region33: #{tpu_custom_call.1} parent=23 // pred_check
          %p202 = pneg %p87
        $region34: #{tpu_custom_call.1} parent=23 // pred_check_branch
          %204 = sbr.rel (%p202) target = $region36
        $region35: #{tpu_custom_call.1} parent=23 // pred_region
          %p205 = scmp.lt.s32.totalorder %s15, 1
          %s206 = scalar_select %p205, %s15, 1
          %s207 = smul.addr %s206, 2
          %s208 = smul.addr %s207, 4
          %s209 = scalar_lea.vmem %s2, %s208
        $region36: #{tpu_custom_call.1} parent=23 // pred_fallthru
          _
      $region24: #{tpu_custom_call.1} parent=5 // pred_fallthru
        _
      %p210 = scmp.le.s32.totalorder 1, %s15
      %p211 = scmp.lt.s32.totalorder %s15, 3
      %p212 = pnand %p210, %p211
      %p213 = pneg %p212
      // Predicated region
      $region37: #{tpu_custom_call.1} parent=5 // pred_check
        _
      $region38: #{tpu_custom_call.1} parent=5 // pred_check_branch
        %215 = sbr.rel (%p212) target = $region40
      $region39: #{tpu_custom_call.1} parent=5 // pred_region
        %s216 = ssub.s32 %s15, 1
        %p217 = scmp.lt.s32.totalorder %s20, 1
        %s218 = scalar_select %p217, %s20, 1
        %s219 = smul.addr %s218, 2
        %s220 = smul.addr %s219, 4
        %s221 = scalar_lea.vmem %s0, %s220
        %p222 = pneg %p41
        %p223 = pneg %p38
        %p224 = scmp.lt.s32.totalorder %s20, 1
        %s225 = scalar_select %p224, %s20, 1
        %s226 = smul.addr %s225, 2
        %s227 = smul.addr %s226, 4
        %s228 = scalar_lea.vmem %s1, %s227
        %p229 = pneg %p67
        %p230 = pneg %p64
        %p231 = scmp.lt.s32.totalorder %s20, 1
        %s232 = scalar_select %p231, %s20, 1
        %s233 = smul.addr %s232, 2
        %s234 = smul.addr %s233, 4
        %s235 = scalar_lea.vmem %s2, %s234
        %p236 = pneg %p93
        %p237 = pneg %p90
        %p238 = pneg %p114
        %p239 = pneg %p111
        %p240 = pneg %p135
        %p241 = pneg %p132
        %p242 = pneg %p161
        %p243 = pneg %p158
        %s244 = sand.u32 %s148, 1
        %s245 = scalar_lea.sflag [#allocation4], %s244
        %s246 = sand.u32 %s148, 1
        %s247 = smul.addr %s246, 12
        %s248 = scalar_lea.vmem [#allocation3], %s247
        %p249 = scmp.lt.s32.totalorder %s20, 1
        %s250 = scalar_select %p249, %s20, 1
        %s251 = smul.addr %s250, 2
        %s252 = smul.addr %s251, 4
        %s253 = scalar_lea.vmem %s0, %s252
        %p254 = scmp.lt.s32.totalorder %s20, 1
        %s255 = scalar_select %p254, %s20, 1
        %s256 = smul.addr %s255, 2
        %s257 = smul.addr %s256, 4
        %s258 = scalar_lea.vmem %s1, %s257
        %p259 = scmp.lt.s32.totalorder %s20, 1
        %s260 = scalar_select %p259, %s20, 1
        %s261 = smul.addr %s260, 2
        %s262 = smul.addr %s261, 4
        %s263 = scalar_lea.vmem %s2, %s262
        %s265 = sld [smem:[#allocation2]]
        %v266 = vld [vmem:[%s3] sm:$0xf]
        %v267 = vld [vmem:[%s3 + $0x4] sm:$0xf]
        %v268 = vld [vmem:[%s253] sm:$0xf]
        %v269 = vld [vmem:[%s253 + $0x4] sm:$0xf]
        %v270 = vstv %s265
        %v273 = vunpack.c.l.b16 %v268
        %v274 = vunpack.c.l.b16 %v269
        %v275 = vpack.c.b16 %v274, %v273
        %277 = vxpose.xlu0.c.b16.start [1/8] %v275, 128
        %278 = vxpose.xlu0.c.b16.cont [2/8] 0, 128
        %279 = vxpose.xlu0.c.b16.cont [3/8] 0, 128
        %280 = vxpose.xlu0.c.b16.cont [4/8] 0, 128
        %281 = vxpose.xlu0.c.b16.cont [5/8] 0, 128
        %282 = vxpose.xlu0.c.b16.cont [6/8] 0, 128
        %283 = vxpose.xlu0.c.b16.cont [7/8] 0, 128
        %284 = vxpose.xlu0.c.b16.end [8/8] 0, 128
        %v285 = vpop.trf.xlu0
        %v286 = vpop.trf.xlu0
        %v287 = vpop.trf.xlu0
        %v288 = vpop.trf.xlu0
        %v289 = vpop.trf.xlu0
        %v290 = vpop.trf.xlu0
        %v291 = vpop.trf.xlu0
        %v292 = vpop.trf.xlu0
        %v295 = vunpack.c.l.b16 %v266
        %v296 = vunpack.c.l.b16 %v267
        %v297 = vpack.c.b16 %v296, %v295
        %vm299 = vcmask 130048
        %v301 = vsel %vm299, %v285, 0
        %303 = vmatprep.subr.bf16.mxu0 0
        %304 = vmatpush1.bf16.msra.mxu0 %v297
        %305 = vmatprep.subr.bf16.mxu0 0
        %306 = vmatpush1.bf16.msra.mxu0 0
        %307 = vmatprep.subr.bf16.mxu0 0
        %308 = vmatpush1.bf16.msra.mxu0 0
        %309 = vmatprep.subr.bf16.mxu0 0
        %310 = vmatpush1.bf16.msra.mxu0 0
        %311 = vmatprep.subr.bf16.mxu0 0
        %312 = vmatpush1.bf16.msra.mxu0 0
        %313 = vmatprep.subr.bf16.mxu0 0
        %314 = vmatpush1.bf16.msra.mxu0 0
        %315 = vmatprep.subr.bf16.mxu0 0
        %316 = vmatpush1.bf16.msra.mxu0 0
        %317 = vmatprep.subr.bf16.mxu0 0
        %318 = vmatpush1.bf16.msra.mxu0 0
        %319 = vmatprep.subr.bf16.mxu0 0
        %320 = vmatpush1.bf16.msra.mxu0 0
        %321 = vmatprep.subr.bf16.mxu0 0
        %322 = vmatpush1.bf16.msra.mxu0 0
        %323 = vmatprep.subr.bf16.mxu0 0
        %324 = vmatpush1.bf16.msra.mxu0 0
        %325 = vmatprep.subr.bf16.mxu0 0
        %326 = vmatpush1.bf16.msra.mxu0 0
        %327 = vmatprep.subr.bf16.mxu0 0
        %328 = vmatpush1.bf16.msra.mxu0 0
        %329 = vmatprep.subr.bf16.mxu0 0
        %330 = vmatpush1.bf16.msra.mxu0 0
        %331 = vmatprep.subr.bf16.mxu0 0
        %332 = vmatpush1.bf16.msra.mxu0 0
        %333 = vmatprep.subr.bf16.mxu0 0
        %334 = vmatpush1.bf16.msra.mxu0 0
        %335 = vmatprep.mubr.bf16.mxu0 0
        %336 = vmatmul.mubr.bf16.gmra.mrb[0].mxu0 %v301
        %v337 = vpop.f32.mrb[0].mxu0
        %v338 = vadd.f32 %v270, %v337
        %v339 = vpop.f32.mrb[0].mxu0
        %v340 = vpop.f32.mrb[0].mxu0
        %v341 = vpop.f32.mrb[0].mxu0
        %342 = vdwg.mxu0
        %343 = vst [vmem:[%s248] sm:$0xf] %v338
        %v344 = vld [vmem:[%s258] sm:$0xf]
        %v345 = vld [vmem:[%s258 + $0x4] sm:$0xf]
        %v348 = vunpack.c.l.b16 %v344
        %v349 = vunpack.c.l.b16 %v345
        %v350 = vpack.c.b16 %v349, %v348
        %352 = vxpose.xlu0.c.b16.start [1/8] %v350, 128
        %353 = vxpose.xlu0.c.b16.cont [2/8] 0, 128
        %354 = vxpose.xlu0.c.b16.cont [3/8] 0, 128
        %355 = vxpose.xlu0.c.b16.cont [4/8] 0, 128
        %356 = vxpose.xlu0.c.b16.cont [5/8] 0, 128
        %357 = vxpose.xlu0.c.b16.cont [6/8] 0, 128
        %358 = vxpose.xlu0.c.b16.cont [7/8] 0, 128
        %359 = vxpose.xlu0.c.b16.end [8/8] 0, 128
        %v360 = vpop.trf.xlu0
        %v361 = vpop.trf.xlu0
        %v362 = vpop.trf.xlu0
        %v363 = vpop.trf.xlu0
        %v364 = vpop.trf.xlu0
        %v365 = vpop.trf.xlu0
        %v366 = vpop.trf.xlu0
        %v367 = vpop.trf.xlu0
        %v369 = vsel %vm299, %v360, 0
        %371 = vmatprep.subr.bf16.mxu0 0
        %372 = vmatpush1.bf16.msra.mxu0 %v297
        %373 = vmatprep.subr.bf16.mxu0 0
        %374 = vmatpush1.bf16.msra.mxu0 0
        %375 = vmatprep.subr.bf16.mxu0 0
        %376 = vmatpush1.bf16.msra.mxu0 0
        %377 = vmatprep.subr.bf16.mxu0 0
        %378 = vmatpush1.bf16.msra.mxu0 0
        %379 = vmatprep.subr.bf16.mxu0 0
        %380 = vmatpush1.bf16.msra.mxu0 0
        %381 = vmatprep.subr.bf16.mxu0 0
        %382 = vmatpush1.bf16.msra.mxu0 0
        %383 = vmatprep.subr.bf16.mxu0 0
        %384 = vmatpush1.bf16.msra.mxu0 0
        %385 = vmatprep.subr.bf16.mxu0 0
        %386 = vmatpush1.bf16.msra.mxu0 0
        %387 = vmatprep.subr.bf16.mxu0 0
        %388 = vmatpush1.bf16.msra.mxu0 0
        %389 = vmatprep.subr.bf16.mxu0 0
        %390 = vmatpush1.bf16.msra.mxu0 0
        %391 = vmatprep.subr.bf16.mxu0 0
        %392 = vmatpush1.bf16.msra.mxu0 0
        %393 = vmatprep.subr.bf16.mxu0 0
        %394 = vmatpush1.bf16.msra.mxu0 0
        %395 = vmatprep.subr.bf16.mxu0 0
        %396 = vmatpush1.bf16.msra.mxu0 0
        %397 = vmatprep.subr.bf16.mxu0 0
        %398 = vmatpush1.bf16.msra.mxu0 0
        %399 = vmatprep.subr.bf16.mxu0 0
        %400 = vmatpush1.bf16.msra.mxu0 0
        %401 = vmatprep.subr.bf16.mxu0 0
        %402 = vmatpush1.bf16.msra.mxu0 0
        %403 = vmatprep.mubr.bf16.mxu0 0
        %404 = vmatmul.mubr.bf16.gmra.mrb[0].mxu0 %v369
        %v405 = vpop.f32.mrb[0].mxu0
        %v406 = vadd.f32 %v270, %v405
        %v407 = vpop.f32.mrb[0].mxu0
        %v408 = vpop.f32.mrb[0].mxu0
        %v409 = vpop.f32.mrb[0].mxu0
        %410 = vdwg.mxu0
        %s411 = scalar_lea.vmem %s248, 4 [#allocation3]
        %412 = vst [vmem:[%s411] sm:$0xf] %v406
        %v413 = vld [vmem:[%s263] sm:$0xf]
        %v414 = vld [vmem:[%s263 + $0x4] sm:$0xf]
        %v417 = vunpack.c.l.b16 %v413
        %v418 = vunpack.c.l.b16 %v414
        %v419 = vpack.c.b16 %v418, %v417
        %421 = vxpose.xlu0.c.b16.start [1/8] %v419, 128
        %422 = vxpose.xlu0.c.b16.cont [2/8] 0, 128
        %423 = vxpose.xlu0.c.b16.cont [3/8] 0, 128
        %424 = vxpose.xlu0.c.b16.cont [4/8] 0, 128
        %425 = vxpose.xlu0.c.b16.cont [5/8] 0, 128
        %426 = vxpose.xlu0.c.b16.cont [6/8] 0, 128
        %427 = vxpose.xlu0.c.b16.cont [7/8] 0, 128
        %428 = vxpose.xlu0.c.b16.end [8/8] 0, 128
        %v429 = vpop.trf.xlu0
        %v430 = vpop.trf.xlu0
        %v431 = vpop.trf.xlu0
        %v432 = vpop.trf.xlu0
        %v433 = vpop.trf.xlu0
        %v434 = vpop.trf.xlu0
        %v435 = vpop.trf.xlu0
        %v436 = vpop.trf.xlu0
        %v438 = vsel %vm299, %v429, 0
        %440 = vmatprep.subr.bf16.mxu0 0
        %441 = vmatpush1.bf16.msra.mxu0 %v297
        %442 = vmatprep.subr.bf16.mxu0 0
        %443 = vmatpush1.bf16.msra.mxu0 0
        %444 = vmatprep.subr.bf16.mxu0 0
        %445 = vmatpush1.bf16.msra.mxu0 0
        %446 = vmatprep.subr.bf16.mxu0 0
        %447 = vmatpush1.bf16.msra.mxu0 0
        %448 = vmatprep.subr.bf16.mxu0 0
        %449 = vmatpush1.bf16.msra.mxu0 0
        %450 = vmatprep.subr.bf16.mxu0 0
        %451 = vmatpush1.bf16.msra.mxu0 0
        %452 = vmatprep.subr.bf16.mxu0 0
        %453 = vmatpush1.bf16.msra.mxu0 0
        %454 = vmatprep.subr.bf16.mxu0 0
        %455 = vmatpush1.bf16.msra.mxu0 0
        %456 = vmatprep.subr.bf16.mxu0 0
        %457 = vmatpush1.bf16.msra.mxu0 0
        %458 = vmatprep.subr.bf16.mxu0 0
        %459 = vmatpush1.bf16.msra.mxu0 0
        %460 = vmatprep.subr.bf16.mxu0 0
        %461 = vmatpush1.bf16.msra.mxu0 0
        %462 = vmatprep.subr.bf16.mxu0 0
        %463 = vmatpush1.bf16.msra.mxu0 0
        %464 = vmatprep.subr.bf16.mxu0 0
        %465 = vmatpush1.bf16.msra.mxu0 0
        %466 = vmatprep.subr.bf16.mxu0 0
        %467 = vmatpush1.bf16.msra.mxu0 0
        %468 = vmatprep.subr.bf16.mxu0 0
        %469 = vmatpush1.bf16.msra.mxu0 0
        %470 = vmatprep.subr.bf16.mxu0 0
        %471 = vmatpush1.bf16.msra.mxu0 0
        %472 = vmatprep.mubr.bf16.mxu0 0
        %473 = vmatmul.mubr.bf16.gmra.mrb[0].mxu0 %v438
        %v474 = vpop.f32.mrb[0].mxu0
        %v475 = vadd.f32 %v270, %v474
        %v476 = vpop.f32.mrb[0].mxu0
        %v477 = vpop.f32.mrb[0].mxu0
        %v478 = vpop.f32.mrb[0].mxu0
        %479 = vdwg.mxu0
        %s480 = scalar_lea.vmem %s248, 8 [#allocation3]
        %481 = vst [vmem:[%s480] sm:$0xf] %v475
        %s482 = sand.u32 %s148, 1
        %s483 = scalar_lea.sflag [#allocation4], %s482
        %s484 = sand.u32 %s148, 1
        %s485 = smul.addr %s484, 12
        %s486 = scalar_lea.vmem [#allocation3], %s485
        // Predicated region
        $region41: #{tpu_custom_call.1} parent=39 // pred_check
          %p487 = pneg %p158
        $region42: #{tpu_custom_call.1} parent=39 // pred_check_branch
          %489 = sbr.rel (%p487) target = $region44
        $region43: #{tpu_custom_call.1} parent=39 // pred_region
          %s491 = ssub.s32 192, 192
          %492 = vsyncadd %s483, %s491
          %s493 = smul.addr %s20, 3
          %s494 = smul.addr %s493, 64
          %s495 = scalar_lea.hbm %s5, %s494
          %s496 = sshll.u32 %s486, 4
          %s497 = int_to_ptr.vmem [resolvable:$true] %s496
          %502 = dma.vmem_to_hbm [thread:$0]  %s497, 192, %s495, %s483, 64, 64, 4
        $region44: #{tpu_custom_call.1} parent=39 // pred_fallthru
          _
      $region40: #{tpu_custom_call.1} parent=5 // pred_fallthru
        _
      %p503 = scmp.le.s32.totalorder 2, %s15
      // Predicated region
      $region45: #{tpu_custom_call.1} parent=5 // pred_check
        %p504 = pneg %p503
      $region46: #{tpu_custom_call.1} parent=5 // pred_check_branch
        %506 = sbr.rel (%p504) target = $region48
      $region47: #{tpu_custom_call.1} parent=5 // pred_region
        %s507 = ssub.s32 %s15, 2
        // Predicated region
        $region49: #{tpu_custom_call.1} parent=47 // pred_check
          %p508 = pneg %p164
        $region50: #{tpu_custom_call.1} parent=47 // pred_check_branch
          %510 = sbr.rel (%p508) target = $region52
        $region51: #{tpu_custom_call.1} parent=47 // pred_region
          %s511 = sand.u32 %s149, 1
          %s512 = scalar_lea.sflag [#allocation4], %s511
          %s513 = sand.u32 %s149, 1
          %s514 = smul.addr %s513, 12
          %s515 = scalar_lea.vmem [#allocation3], %s514
          %516 = dma.done %s512, 192
        $region52: #{tpu_custom_call.1} parent=47 // pred_fallthru
          _
      $region48: #{tpu_custom_call.1} parent=5 // pred_fallthru
        _
    $region6: #{tpu_custom_call.1} parent=1 // loop_footer
      %s19 = sadd.s32 1, %s15
    $region7: #{tpu_custom_call.1} parent=1 // loop_footer_branch
      %14 = sbr.rel target = $region3
    $region8: #{tpu_custom_call.1} parent=1 // loop_exit
      _
    %517 = vsyncpa [#allocation4], 1
    %s518 = scalar_lea.sflag [#allocation4], 1
    %519 = vsyncpa %s518, 1

</llo_original>
